<compile_context>
chip_gen: v5e
topology: v5e:2x2
jax: 0.10.0
libtpu: 0.0.40
codegen_flags: <defaults>
</compile_context>

<pallas_src>
import functools

import jax
import jax.numpy as jnp
from jax.experimental import pallas as pl
from jax.experimental.pallas import tpu as pltpu


def _round_up(x, m):
    return ((x + m - 1) // m) * m


def _tok_conv_relu_maxpool_kernel(tok_ref, w_ref, b_ref, o_ref, mx_ref, *,
                                  K, Vp, Lout, TT):
    """One (batch-group, time-chunk) grid step.

    tok_ref: (1, TB, TT+K-1) int32  token ids for this chunk (K-1 overlap baked in)
    w_ref:   (K*Vp, Hp)      bf16   embedding-folded conv LUT (VMEM resident)
    b_ref:   (1, Hp)         f32    conv bias (VMEM resident)
    o_ref:   (TB, Hp)        f32    pooled output per sequence
    mx_ref:  (TB, Hp)        f32    running max across time chunks (scratch)
    """
    t = pl.program_id(1)

    @pl.when(t == 0)
    def _():
        mx_ref[...] = jnp.full_like(mx_ref, -jnp.inf)

    TB, Hp = o_ref.shape
    tok = tok_ref[0]                                           # (TB, TT+K-1)

    # One-hot im2col of the token ids: one 128-lane slab per tap (VPU compares,
    # never touches HBM).
    lane = jax.lax.broadcasted_iota(jnp.int32, (TB, TT, Vp), 2)
    parts = []
    for k in range(K):
        tok_k = tok[:, k:k + TT]                               # (TB, TT) static slice
        parts.append((tok_k[:, :, None] == lane).astype(jnp.bfloat16))
    onehot = jnp.concatenate(parts, axis=-1).reshape(TB * TT, K * Vp)

    # Single deep MXU contraction against the embedding-folded conv LUT.
    acc = jnp.dot(onehot, w_ref[...], preferred_element_type=jnp.float32)
    acc = acc.reshape(TB, TT, Hp)

    # Mask output positions beyond the valid conv length (exact), fold the
    # chunk into the running max over time.
    pos = t * TT + jax.lax.broadcasted_iota(jnp.int32, (1, TT, 1), 1)
    acc = jnp.where(pos < Lout, acc, -jnp.inf)
    mx_ref[...] = jnp.maximum(mx_ref[...], jnp.max(acc, axis=1))

    @pl.when(t == pl.num_programs(1) - 1)
    def _():
        # Bias + ReLU after the max (exact: bias constant over time, ReLU monotone).
        o_ref[...] = jnp.maximum(mx_ref[...] + b_ref[...], 0.0)


def protein_cnn_forward(seqs, embed_table, conv_w, conv_b, *,
                        target_m=4096, time_chunk=256):
    """seqs: (B, L) int token ids.
    embed_table: (V, E) f32 (row 0 = padding, zeros).
    conv_w: (H, E, K) f32 (PyTorch Conv1d weight layout).
    conv_b: (H,) f32.
    Returns (B, H) f32.
    """
    B, L = seqs.shape
    V, E = embed_table.shape
    H, E_w, K = conv_w.shape
    assert E == E_w, (E, E_w)
    assert L >= K, f"sequence length {L} must be >= kernel_size {K}"

    Lout = L - K + 1
    Vp = _round_up(V, 128)            # one-hot lane width per tap
    Hp = _round_up(H, 128)            # lane-dense output width

    # Time-chunk size (conv output positions per step along the reduction axis).
    TT0 = min(_round_up(time_chunk, 8), _round_up(Lout, 8))
    n_tc = pl.cdiv(Lout, TT0)
    TT = _round_up(pl.cdiv(Lout, n_tc), 8)        # even chunks, sublane aligned
    Lout_pad = n_tc * TT
    TTK = TT + K - 1
    Lp = Lout_pad + K - 1                         # token positions needed (>= L)

    # Sequences per batch-group step: fill M = TB*TT ~ target_m rows of MXU work.
    tb = max(1, target_m // TT)
    if tb >= B:
        TB, B_pad = B, B
    else:
        TB = max(8, (tb // 8) * 8)                # keep (TB, Hp) blocks sublane-dense
        B_pad = _round_up(B, TB)
    # v7x has 2 TensorCores: give the "parallel" batch axis >= 2 steps when it
    # stays tile-aligned.
    if B_pad // TB == 1 and TB % 16 == 0:
        TB //= 2

    # ---- glue (id-sized only; no activation / im2col ever hits HBM) ---------
    seqs_p = jnp.pad(seqs.astype(jnp.int32), ((0, B_pad - B), (0, Lp - L)))
    # Per-chunk token windows (K-1 overlap baked in): (n_tc, B_pad, TT+K-1).
    win = jnp.arange(n_tc)[:, None] * TT + jnp.arange(TTK)[None, :]
    tok_chunks = jnp.transpose(seqs_p[:, win], (1, 0, 2))

    # Embedding folded into the conv weights: (K, V, H) token->hidden LUT,
    # flattened to (K*Vp, Hp), bf16, kept VMEM-resident by the kernel.
    w_tok = jnp.einsum("ve,hek->kvh", embed_table.astype(jnp.float32),
                       conv_w.astype(jnp.float32))
    w_lut = jnp.zeros((K, Vp, Hp), jnp.float32).at[:, :V, :H].set(w_tok)
    w_lut = w_lut.reshape(K * Vp, Hp).astype(jnp.bfloat16)
    b_1h = jnp.zeros((1, Hp), jnp.float32).at[:, :H].set(conv_b.astype(jnp.float32))

    # Explicit VMEM budget (double-buffered inputs + in-kernel one-hot / acc),
    # with headroom; safe on v5e/v6e (128 MiB) and v7x (64 MiB).
    m_rows = TB * TT
    est = (2 * TB * TTK * 4 + 2 * K * Vp * Hp * 2
           + 2 * m_rows * K * Vp * 2 + m_rows * Hp * 4 + 2 * TB * Hp * 4)
    vmem_limit = int(min(48 * 2**20, max(32 * 2**20, 2 * est)))

    kernel = functools.partial(_tok_conv_relu_maxpool_kernel,
                               K=K, Vp=Vp, Lout=Lout, TT=TT)
    out = pl.pallas_call(
        kernel,
        out_shape=jax.ShapeDtypeStruct((B_pad, Hp), jnp.float32),
        grid_spec=pltpu.PrefetchScalarGridSpec(
            num_scalar_prefetch=0,
            grid=(B_pad // TB, n_tc),
            in_specs=[
                pl.BlockSpec((1, TB, TTK), lambda g, t: (t, g, 0)),   # token ids
                pl.BlockSpec((K * Vp, Hp), lambda g, t: (0, 0)),      # resident LUT
                pl.BlockSpec((1, Hp), lambda g, t: (0, 0)),           # resident bias
            ],
            out_specs=pl.BlockSpec((TB, Hp), lambda g, t: (g, 0)),
            scratch_shapes=[pltpu.VMEM((TB, Hp), jnp.float32)],
        ),
        compiler_params=pltpu.CompilerParams(
            dimension_semantics=("parallel", "arbitrary"),
            vmem_limit_bytes=vmem_limit,
        ),
    )(tok_chunks, w_lut, b_1h)
    return out[:B, :H]


def _reference_forward(seqs, embed_table, conv_w, conv_b):
    """Pure-JAX f32 reference mirroring the PyTorch semantics."""
    x = jnp.take(embed_table, seqs, axis=0)                   # (B, L, E)
    H, E, K = conv_w.shape
    L = x.shape[1]
    Lout = L - K + 1
    w_keh = jnp.transpose(conv_w, (2, 1, 0))                  # (K, E, H)
    acc = jnp.zeros((x.shape[0], Lout, H), dtype=jnp.float32)
    for k in range(K):
        acc = acc + jnp.einsum("ble,eh->blh", x[:, k:k + Lout, :], w_keh[k])
    acc = jnp.maximum(acc + conv_b[None, None, :], 0.0)
    return jnp.max(acc, axis=1)                               # (B, H)


if __name__ == "__main__":
    # Module defaults, small sequence length.
    VOCAB, EMBED, HIDDEN, KSIZE = 26, 50, 128, 5
    B, L = 2, 16

    key = jax.random.PRNGKey(0)
    k_emb, k_w, k_b, k_seq = jax.random.split(key, 4)

    embed_table = jax.random.normal(k_emb, (VOCAB, EMBED), dtype=jnp.float32)
    embed_table = embed_table.at[0].set(0.0)                  # padding_idx=0
    conv_w = 0.1 * jax.random.normal(k_w, (HIDDEN, EMBED, KSIZE), dtype=jnp.float32)
    conv_b = 0.1 * jax.random.normal(k_b, (HIDDEN,), dtype=jnp.float32)

    seqs = jax.random.randint(k_seq, (B, L), 0, VOCAB, dtype=jnp.int32)

    out = jax.block_until_ready(protein_cnn_forward(seqs, embed_table, conv_w, conv_b))

    ref = _reference_forward(seqs, embed_table, conv_w, conv_b)
    assert out.shape == (B, HIDDEN), out.shape
    # bf16 LUT with exact one-hot + f32 accumulation -> small error vs f32 reference.
    assert jnp.allclose(out, ref, atol=5e-2, rtol=5e-2), float(
        jnp.max(jnp.abs(out - ref)))

    print("KERNEL_OK")
</pallas_src>

<mosaic_0001>
module attributes {stable_mosaic.version = 11 : i64} {
  func.func @_tok_conv_relu_maxpool_kernel(%arg0: i32, %arg1: i32, %arg2: memref<1x2x20xi32, #tpu.memory_space<vmem>>, %arg3: memref<640x128xbf16, #tpu.memory_space<vmem>>, %arg4: memref<1x128xf32, #tpu.memory_space<vmem>>, %arg5: memref<2x128xf32, #tpu.memory_space<vmem>>, %arg6: memref<2x128xf32, #tpu.memory_space<vmem>>) attributes {dimension_semantics = [#tpu.dimension_semantics<parallel>, #tpu.dimension_semantics<arbitrary>], iteration_bounds = array<i64: 1, 1>, scalar_prefetch = 0 : i64, scratch_operands = 1 : i64, tpu.core_type = #tpu.core_type<tc>, window_params = [{transform_indices = @transform_0, window_bounds = array<i64: 1, 2, 20>}, {pipeline_mode = #tpu.pipeline_mode<synchronous>, transform_indices = @transform_1, window_bounds = array<i64: 640, 128>}, {pipeline_mode = #tpu.pipeline_mode<synchronous>, transform_indices = @transform_2, window_bounds = array<i64: 1, 128>}, {transform_indices = @transform_3, window_bounds = array<i64: 2, 128>}]} {
    %c0_i32 = arith.constant 0 : i32
    %0 = arith.cmpi eq, %arg1, %c0_i32 : i32
    %1 = arith.extui %0 : i1 to i32
    %c0_i32_0 = arith.constant 0 : i32
    %2 = arith.cmpi ne, %1, %c0_i32_0 : i32
    scf.if %2 {
      %cst_13 = arith.constant 0xFF800000 : f32
      %63 = vector.broadcast %cst_13 : f32 to vector<2x128xf32>
      %c0_14 = arith.constant 0 : index
      %c0_15 = arith.constant 0 : index
      %64 = vector.load %arg6[%c0_14, %c0_15] : memref<2x128xf32, #tpu.memory_space<vmem>>, vector<2x128xf32>
      tpu.vector_store %arg6[%c0_14, %c0_15], %63 {strides = array<i32>} : memref<2x128xf32, #tpu.memory_space<vmem>>, vector<2x128xf32>,
    } else {
    }
    %c0 = arith.constant 0 : index
    %c0_1 = arith.constant 0 : index
    %c0_2 = arith.constant 0 : index
    %3 = vector.load %arg2[%c0, %c0_1, %c0_2] : memref<1x2x20xi32, #tpu.memory_space<vmem>>, vector<1x2x20xi32>
    %4 = vector.shape_cast %3 : vector<1x2x20xi32> to vector<2x20xi32>
    %5 = tpu.iota {dimensions = array<i32: 2>} : vector<2x16x128xi32>
    %6 = vector.extract_strided_slice %4 {offsets = [0, 0], sizes = [2, 16], strides = [1, 1]} : vector<2x20xi32> to vector<2x16xi32>
    %7 = vector.shape_cast %6 : vector<2x16xi32> to vector<2x16x1xi32>
    %8 = vector.broadcast %7 : vector<2x16x1xi32> to vector<2x16x128xi32>
    %9 = arith.cmpi eq, %8, %5 : vector<2x16x128xi32>
    %10 = arith.extui %9 : vector<2x16x128xi1> to vector<2x16x128xi32>
    %11 = arith.sitofp %10 : vector<2x16x128xi32> to vector<2x16x128xf32>
    %12 = arith.truncf %11 : vector<2x16x128xf32> to vector<2x16x128xbf16>
    %13 = vector.extract_strided_slice %4 {offsets = [0, 1], sizes = [2, 16], strides = [1, 1]} : vector<2x20xi32> to vector<2x16xi32>
    %14 = vector.shape_cast %13 : vector<2x16xi32> to vector<2x16x1xi32>
    %15 = vector.broadcast %14 : vector<2x16x1xi32> to vector<2x16x128xi32>
    %16 = arith.cmpi eq, %15, %5 : vector<2x16x128xi32>
    %17 = arith.extui %16 : vector<2x16x128xi1> to vector<2x16x128xi32>
    %18 = arith.sitofp %17 : vector<2x16x128xi32> to vector<2x16x128xf32>
    %19 = arith.truncf %18 : vector<2x16x128xf32> to vector<2x16x128xbf16>
    %20 = vector.extract_strided_slice %4 {offsets = [0, 2], sizes = [2, 16], strides = [1, 1]} : vector<2x20xi32> to vector<2x16xi32>
    %21 = vector.shape_cast %20 : vector<2x16xi32> to vector<2x16x1xi32>
    %22 = vector.broadcast %21 : vector<2x16x1xi32> to vector<2x16x128xi32>
    %23 = arith.cmpi eq, %22, %5 : vector<2x16x128xi32>
    %24 = arith.extui %23 : vector<2x16x128xi1> to vector<2x16x128xi32>
    %25 = arith.sitofp %24 : vector<2x16x128xi32> to vector<2x16x128xf32>
    %26 = arith.truncf %25 : vector<2x16x128xf32> to vector<2x16x128xbf16>
    %27 = vector.extract_strided_slice %4 {offsets = [0, 3], sizes = [2, 16], strides = [1, 1]} : vector<2x20xi32> to vector<2x16xi32>
    %28 = vector.shape_cast %27 : vector<2x16xi32> to vector<2x16x1xi32>
    %29 = vector.broadcast %28 : vector<2x16x1xi32> to vector<2x16x128xi32>
    %30 = arith.cmpi eq, %29, %5 : vector<2x16x128xi32>
    %31 = arith.extui %30 : vector<2x16x128xi1> to vector<2x16x128xi32>
    %32 = arith.sitofp %31 : vector<2x16x128xi32> to vector<2x16x128xf32>
    %33 = arith.truncf %32 : vector<2x16x128xf32> to vector<2x16x128xbf16>
    %34 = vector.extract_strided_slice %4 {offsets = [0, 4], sizes = [2, 16], strides = [1, 1]} : vector<2x20xi32> to vector<2x16xi32>
    %35 = vector.shape_cast %34 : vector<2x16xi32> to vector<2x16x1xi32>
    %36 = vector.broadcast %35 : vector<2x16x1xi32> to vector<2x16x128xi32>
    %37 = arith.cmpi eq, %36, %5 : vector<2x16x128xi32>
    %38 = arith.extui %37 : vector<2x16x128xi1> to vector<2x16x128xi32>
    %39 = arith.sitofp %38 : vector<2x16x128xi32> to vector<2x16x128xf32>
    %40 = arith.truncf %39 : vector<2x16x128xf32> to vector<2x16x128xbf16>
    %41 = tpu.concatenate %12, %19, %26, %33, %40 in 2 : vector<2x16x128xbf16>, vector<2x16x128xbf16>, vector<2x16x128xbf16>, vector<2x16x128xbf16>, vector<2x16x128xbf16> -> vector<2x16x640xbf16>
    %42 = vector.shape_cast %41 : vector<2x16x640xbf16> to vector<32x640xbf16>
    %c0_3 = arith.constant 0 : index
    %c0_4 = arith.constant 0 : index
    %43 = vector.load %arg3[%c0_3, %c0_4] : memref<640x128xbf16, #tpu.memory_space<vmem>>, vector<640x128xbf16>
    %cst = arith.constant dense<0.000000e+00> : vector<32x128xf32>
    %44 = tpu.matmul %42, %43, %cst {dimension_numbers = #tpu.dot_dimension_numbers<[1], [0], [0], [1], [0, 0, 1, 1], [], []>} : vector<32x640xbf16>, vector<640x128xbf16>, vector<32x128xf32> -> vector<32x128xf32>
    %45 = vector.shape_cast %44 : vector<32x128xf32> to vector<2x16x128xf32>
    %c16_i32 = arith.constant 16 : i32
    %46 = arith.muli %arg1, %c16_i32 : i32
    %47 = tpu.iota {dimensions = array<i32: 1>} : vector<1x16x1xi32>
    %48 = vector.broadcast %46 : i32 to vector<1x16x1xi32>
    %49 = arith.addi %48, %47 : vector<1x16x1xi32>
    %c12_i32 = arith.constant 12 : i32
    %50 = vector.broadcast %c12_i32 : i32 to vector<1x16x1xi32>
    %51 = arith.cmpi slt, %49, %50 : vector<1x16x1xi32>
    %cst_5 = arith.constant 0xFF800000 : f32
    %52 = vector.shape_cast %51 : vector<1x16x1xi1> to vector<1x16x1xi1>
    %53 = vector.broadcast %52 : vector<1x16x1xi1> to vector<2x16x128xi1>
    %54 = vector.broadcast %cst_5 : f32 to vector<2x16x128xf32>
    %55 = arith.select %53, %45, %54 : vector<2x16x128xi1>, vector<2x16x128xf32>
    %c0_6 = arith.constant 0 : index
    %c0_7 = arith.constant 0 : index
    %56 = vector.load %arg6[%c0_6, %c0_7] : memref<2x128xf32, #tpu.memory_space<vmem>>, vector<2x128xf32>
    %cst_8 = arith.constant dense<0xFF800000> : vector<2x128xf32>
    %57 = vector.multi_reduction <maximumf>, %55, %cst_8 [1] : vector<2x16x128xf32> to vector<2x128xf32>
    %58 = arith.maximumf %56, %57 : vector<2x128xf32>
    %c0_9 = arith.constant 0 : index
    %c0_10 = arith.constant 0 : index
    %59 = vector.load %arg6[%c0_9, %c0_10] : memref<2x128xf32, #tpu.memory_space<vmem>>, vector<2x128xf32>
    tpu.vector_store %arg6[%c0_9, %c0_10], %58 {strides = array<i32>} : memref<2x128xf32, #tpu.memory_space<vmem>>, vector<2x128xf32>,
    %c0_i32_11 = arith.constant 0 : i32
    %60 = arith.cmpi eq, %arg1, %c0_i32_11 : i32
    %61 = arith.extui %60 : i1 to i32
    %c0_i32_12 = arith.constant 0 : i32
    %62 = arith.cmpi ne, %61, %c0_i32_12 : i32
    scf.if %62 {
      %c0_13 = arith.constant 0 : index
      %c0_14 = arith.constant 0 : index
      %63 = vector.load %arg6[%c0_13, %c0_14] : memref<2x128xf32, #tpu.memory_space<vmem>>, vector<2x128xf32>
      %c0_15 = arith.constant 0 : index
      %c0_16 = arith.constant 0 : index
      %64 = vector.load %arg4[%c0_15, %c0_16] : memref<1x128xf32, #tpu.memory_space<vmem>>, vector<1x128xf32>
      %65 = vector.broadcast %64 : vector<1x128xf32> to vector<2x128xf32>
      %66 = arith.addf %63, %65 : vector<2x128xf32>
      %cst_17 = arith.constant 0.000000e+00 : f32
      %67 = vector.broadcast %cst_17 : f32 to vector<2x128xf32>
      %68 = arith.maximumf %66, %67 : vector<2x128xf32>
      %c0_18 = arith.constant 0 : index
      %c0_19 = arith.constant 0 : index
      %69 = vector.load %arg5[%c0_18, %c0_19] : memref<2x128xf32, #tpu.memory_space<vmem>>, vector<2x128xf32>
      tpu.vector_store %arg5[%c0_18, %c0_19], %68 {strides = array<i32>} : memref<2x128xf32, #tpu.memory_space<vmem>>, vector<2x128xf32>,
    } else {
    }
    return
  }
  func.func @transform_0(%arg0: i32, %arg1: i32) -> (i32, i32, i32) {
    %c0_i32 = arith.constant 0 : i32
    %c0_i32_0 = arith.constant 0 : i32
    return %arg1, %arg0, %c0_i32 : i32, i32, i32
  }
  func.func @transform_1(%arg0: i32, %arg1: i32) -> (i32, i32) {
    %c0_i32 = arith.constant 0 : i32
    %c0_i32_0 = arith.constant 0 : i32
    %c0_i32_1 = arith.constant 0 : i32
    return %c0_i32, %c0_i32_0 : i32, i32
  }
  func.func @transform_2(%arg0: i32, %arg1: i32) -> (i32, i32) {
    %c0_i32 = arith.constant 0 : i32
    %c0_i32_0 = arith.constant 0 : i32
    %c0_i32_1 = arith.constant 0 : i32
    return %c0_i32, %c0_i32_0 : i32, i32
  }
  func.func @transform_3(%arg0: i32, %arg1: i32) -> (i32, i32) {
    %c0_i32 = arith.constant 0 : i32
    %c0_i32_0 = arith.constant 0 : i32
    return %arg0, %c0_i32 : i32, i32
  }
}

</mosaic_0001>

<llo_original>
// kernel: tpu_custom_call.1
$region0: #{tpu_custom_call.1}
  #allocation0 [shape = 'u32[]', space=smem, size = 0x4, offset = 0x4, fixed_abs, tag = 'smem constant byte address 0x4 - core index']
  #allocation1 [shape = 'u32[72,128]{1,0:T(1,128)}', space=vmem, size = 0x9000, scoped, tag = 'internal scratch']
  #allocation2 [shape = 'f32[2,128]{1,0:T(2,128)}', space=vmem, size = 0x400, scoped, tag = 'scratch operand']
  %s0 = inlined_call_operand.hbm [shape: s32[1,2,20], index: 0, kind: input, shape index: {}]
  %s1 = inlined_call_operand.hbm [shape: bf16[640,128], index: 1, kind: input, shape index: {}]
  %s2 = inlined_call_operand.vmem [shape: f32[1,128], index: 2, kind: input, shape index: {}]
  %s3 = inlined_call_operand.hbm [shape: f32[2,128], index: 3, kind: output, shape index: {}]
  %s4 = sld [smem:[#allocation0]]
  $region38: #{tpu_custom_call.1} parent=0
    _
  %s6 = ssub.s32 1, %s4
  %s7 = scalar_select 0, %s6, %s4
  $region1: #{tpu_custom_call.1} parent=0
    #allocation3 [shape = 'u8[1024]{0}', space=vmem, size = 0x400, scoped, tag = 'input window, operand 0, single buffered']
    #allocation4 [shape = 's32[1]{0}', space=sflag, size = 0x4, scoped, tag = 'scoped memory for tpu_custom_call.1']
    #allocation5 [shape = 's32[1]{0}', space=sflag, size = 0x4, scoped, tag = 'scoped memory for tpu_custom_call.1']
    #allocation6 [shape = 'u8[163840]{0}', space=vmem, size = 0x28000, scoped, tag = 'input window, operand 1, single buffered']
    #allocation7 [shape = 's32[1]{0}', space=sflag, size = 0x4, scoped, tag = 'scoped memory for tpu_custom_call.1']
    #allocation8 [shape = 'u8[1024]{0}', space=vmem, size = 0x400, scoped, tag = 'output window, operand 0, single buffered']
    %8 = vsyncpa [#allocation4], 0
    %9 = vsyncpa [#allocation7], 0
    %10 = vsyncpa [#allocation5], 0
    // Predicated region
    $region2: #{tpu_custom_call.1} parent=1 // pred_check
      _
    $region3: #{tpu_custom_call.1} parent=1 // pred_check_branch
      %12 = sbr.rel (0) target = $region5
    $region4: #{tpu_custom_call.1} parent=1 // pred_region
      %14 = vsyncadd [#allocation4], 0
      %s16 = sshll.u32 %s0, 4
      %s17 = int_to_ptr.hbm [resolvable:$true] %s16
      %s18 = sshll.u32 [#allocation3], 4
      %s19 = int_to_ptr.vmem [resolvable:$true] %s18
      %21 = dma.hbm_to_vmem [thread:$0]  %s17, 32, %s19, [#allocation4]
    $region5: #{tpu_custom_call.1} parent=1 // pred_fallthru
      _
    // Predicated region
    $region6: #{tpu_custom_call.1} parent=1 // pred_check
      _
    $region7: #{tpu_custom_call.1} parent=1 // pred_check_branch
      %23 = sbr.rel (0) target = $region9
    $region8: #{tpu_custom_call.1} parent=1 // pred_region
      %25 = vsyncadd [#allocation7], 0
      %s26 = sshll.u32 %s1, 4
      %s27 = int_to_ptr.hbm [resolvable:$true] %s26
      %s28 = sshll.u32 [#allocation6], 4
      %s29 = int_to_ptr.vmem [resolvable:$true] %s28
      %34 = dma.hbm_to_vmem [thread:$0]  %s27, 5120, %s29, [#allocation7], 64, 64, 4
    $region9: #{tpu_custom_call.1} parent=1 // pred_fallthru
      _
    // Predicated region
    $region10: #{tpu_custom_call.1} parent=1 // pred_check
      _
    $region11: #{tpu_custom_call.1} parent=1 // pred_check_branch
      %36 = sbr.rel (0) target = $region13
    $region12: #{tpu_custom_call.1} parent=1 // pred_region
      _
    $region13: #{tpu_custom_call.1} parent=1 // pred_fallthru
      _
    // Predicated region
    $region14: #{tpu_custom_call.1} parent=1 // pred_check
      _
    $region15: #{tpu_custom_call.1} parent=1 // pred_check_branch
      %38 = sbr.rel (0) target = $region17
    $region16: #{tpu_custom_call.1} parent=1 // pred_region
      %40 = dma.done [#allocation4], 32
    $region17: #{tpu_custom_call.1} parent=1 // pred_fallthru
      _
    // Predicated region
    $region18: #{tpu_custom_call.1} parent=1 // pred_check
      _
    $region19: #{tpu_custom_call.1} parent=1 // pred_check_branch
      %42 = sbr.rel (0) target = $region21
    $region20: #{tpu_custom_call.1} parent=1 // pred_region
      %44 = dma.done [#allocation7], 5120
    $region21: #{tpu_custom_call.1} parent=1 // pred_fallthru
      _
    %p45 = scmp.eq.s32.totalorder 0, 0
    // Predicated region
    $region22: #{tpu_custom_call.1} parent=1 // pred_check
      %p46 = pneg %p45
    $region23: #{tpu_custom_call.1} parent=1 // pred_check_branch
      %48 = sbr.rel (%p46) target = $region25
    $region24: #{tpu_custom_call.1} parent=1 // pred_region
      %49 = vst [vmem:[#allocation2] sm:$0x3] -inf
    $region25: #{tpu_custom_call.1} parent=1 // pred_fallthru
      _
    %v50 = vld [vmem:[#allocation3] sm:$0x3]
    %v51 = vlaneseq
    %v52 = vand.u32 %v51, 127
    %v53 = vperm.slane %v50, 0
    %v54 = vlaneseq
    %v55 = vshrl.u32 %v54, 7
    %57 = vset.pattern.permute.xlu0 %v55
    %58 = vperm.xlu0 %57, %v53
    %v59 = vpop.permute.xlu0 %58
    %v60 = vlaneseq
    %v61 = vshrl.u32 %v60, 7
    %v62 = vadd.s32 %v61, 8
    %63 = vset.pattern.permute.xlu0 %v62
    %64 = vperm.xlu0 %63, %v53
    %v65 = vpop.permute.xlu0 %64
    %v66 = vperm.slane %v50, 1
    %v67 = vlaneseq
    %v68 = vshrl.u32 %v67, 7
    %70 = vset.pattern.permute.xlu0 %v68
    %71 = vperm.xlu0 %70, %v66
    %v72 = vpop.permute.xlu0 %71
    %v73 = vlaneseq
    %v74 = vshrl.u32 %v73, 7
    %v75 = vadd.s32 %v74, 8
    %76 = vset.pattern.permute.xlu0 %v75
    %77 = vperm.xlu0 %76, %v66
    %v78 = vpop.permute.xlu0 %77
    %vm79 = vcmp.eq.s32.totalorder %v59, %v52
    %vm80 = vcmp.eq.s32.totalorder %v65, %v52
    %vm81 = vcmp.eq.s32.totalorder %v72, %v52
    %vm82 = vcmp.eq.s32.totalorder %v78, %v52
    %v83 = vsel %vm79, 1, 0
    %v84 = vsel %vm80, 1, 0
    %v85 = vsel %vm81, 1, 0
    %v86 = vsel %vm82, 1, 0
    %v87 = vcvt.s32.f32 %v83
    %v88 = vcvt.s32.f32 %v84
    %v89 = vcvt.s32.f32 %v85
    %v90 = vcvt.s32.f32 %v86
    %v91 = vpack.c.bf16 %v87, %v87
    %v92 = vpack.c.bf16 %v88, %v88
    %v93 = vpack.c.bf16 %v89, %v89
    %v94 = vpack.c.bf16 %v90, %v90
    %v95 = vlaneseq
    %v96 = vshrl.u32 %v95, 7
    %v97 = vadd.s32 %v96, 1
    %98 = vset.pattern.permute.xlu0 %v97
    %99 = vperm.xlu0 %98, %v53
    %v100 = vpop.permute.xlu0 %99
    %v101 = vlaneseq
    %v102 = vshrl.u32 %v101, 7
    %v103 = vadd.s32 %v102, 9
    %104 = vset.pattern.permute.xlu0 %v103
    %105 = vperm.xlu0 %104, %v53
    %v106 = vpop.permute.xlu0 %105
    %v107 = vlaneseq
    %v108 = vshrl.u32 %v107, 7
    %v109 = vadd.s32 %v108, 1
    %110 = vset.pattern.permute.xlu0 %v109
    %111 = vperm.xlu0 %110, %v66
    %v112 = vpop.permute.xlu0 %111
    %v113 = vlaneseq
    %v114 = vshrl.u32 %v113, 7
    %v115 = vadd.s32 %v114, 9
    %116 = vset.pattern.permute.xlu0 %v115
    %117 = vperm.xlu0 %116, %v66
    %v118 = vpop.permute.xlu0 %117
    %vm119 = vcmp.eq.s32.totalorder %v100, %v52
    %vm120 = vcmp.eq.s32.totalorder %v106, %v52
    %vm121 = vcmp.eq.s32.totalorder %v112, %v52
    %vm122 = vcmp.eq.s32.totalorder %v118, %v52
    %v123 = vsel %vm119, 1, 0
    %v124 = vsel %vm120, 1, 0
    %v125 = vsel %vm121, 1, 0
    %v126 = vsel %vm122, 1, 0
    %v127 = vcvt.s32.f32 %v123
    %v128 = vcvt.s32.f32 %v124
    %v129 = vcvt.s32.f32 %v125
    %v130 = vcvt.s32.f32 %v126
    %v131 = vpack.c.bf16 %v127, %v127
    %v132 = vpack.c.bf16 %v128, %v128
    %v133 = vpack.c.bf16 %v129, %v129
    %v134 = vpack.c.bf16 %v130, %v130
    %v135 = vlaneseq
    %v136 = vshrl.u32 %v135, 7
    %v137 = vadd.s32 %v136, 2
    %138 = vset.pattern.permute.xlu0 %v137
    %139 = vperm.xlu0 %138, %v53
    %v140 = vpop.permute.xlu0 %139
    %v141 = vlaneseq
    %v142 = vshrl.u32 %v141, 7
    %v143 = vadd.s32 %v142, 10
    %144 = vset.pattern.permute.xlu0 %v143
    %145 = vperm.xlu0 %144, %v53
    %v146 = vpop.permute.xlu0 %145
    %v147 = vlaneseq
    %v148 = vshrl.u32 %v147, 7
    %v149 = vadd.s32 %v148, 2
    %150 = vset.pattern.permute.xlu0 %v149
    %151 = vperm.xlu0 %150, %v66
    %v152 = vpop.permute.xlu0 %151
    %v153 = vlaneseq
    %v154 = vshrl.u32 %v153, 7
    %v155 = vadd.s32 %v154, 10
    %156 = vset.pattern.permute.xlu0 %v155
    %157 = vperm.xlu0 %156, %v66
    %v158 = vpop.permute.xlu0 %157
    %vm159 = vcmp.eq.s32.totalorder %v140, %v52
    %vm160 = vcmp.eq.s32.totalorder %v146, %v52
    %vm161 = vcmp.eq.s32.totalorder %v152, %v52
    %vm162 = vcmp.eq.s32.totalorder %v158, %v52
    %v163 = vsel %vm159, 1, 0
    %v164 = vsel %vm160, 1, 0
    %v165 = vsel %vm161, 1, 0
    %v166 = vsel %vm162, 1, 0
    %v167 = vcvt.s32.f32 %v163
    %v168 = vcvt.s32.f32 %v164
    %v169 = vcvt.s32.f32 %v165
    %v170 = vcvt.s32.f32 %v166
    %v171 = vpack.c.bf16 %v167, %v167
    %v172 = vpack.c.bf16 %v168, %v168
    %v173 = vpack.c.bf16 %v169, %v169
    %v174 = vpack.c.bf16 %v170, %v170
    %v175 = vlaneseq
    %v176 = vshrl.u32 %v175, 7
    %v177 = vadd.s32 %v176, 3
    %178 = vset.pattern.permute.xlu0 %v177
    %179 = vperm.xlu0 %178, %v53
    %v180 = vpop.permute.xlu0 %179
    %v181 = vlaneseq
    %v182 = vshrl.u32 %v181, 7
    %v183 = vadd.s32 %v182, 11
    %184 = vset.pattern.permute.xlu0 %v183
    %185 = vperm.xlu0 %184, %v53
    %v186 = vpop.permute.xlu0 %185
    %v187 = vlaneseq
    %v188 = vshrl.u32 %v187, 7
    %v189 = vadd.s32 %v188, 3
    %190 = vset.pattern.permute.xlu0 %v189
    %191 = vperm.xlu0 %190, %v66
    %v192 = vpop.permute.xlu0 %191
    %v193 = vlaneseq
    %v194 = vshrl.u32 %v193, 7
    %v195 = vadd.s32 %v194, 11
    %196 = vset.pattern.permute.xlu0 %v195
    %197 = vperm.xlu0 %196, %v66
    %v198 = vpop.permute.xlu0 %197
    %vm199 = vcmp.eq.s32.totalorder %v180, %v52
    %vm200 = vcmp.eq.s32.totalorder %v186, %v52
    %vm201 = vcmp.eq.s32.totalorder %v192, %v52
    %vm202 = vcmp.eq.s32.totalorder %v198, %v52
    %v203 = vsel %vm199, 1, 0
    %v204 = vsel %vm200, 1, 0
    %v205 = vsel %vm201, 1, 0
    %v206 = vsel %vm202, 1, 0
    %v207 = vcvt.s32.f32 %v203
    %v208 = vcvt.s32.f32 %v204
    %v209 = vcvt.s32.f32 %v205
    %v210 = vcvt.s32.f32 %v206
    %v211 = vpack.c.bf16 %v207, %v207
    %v212 = vpack.c.bf16 %v208, %v208
    %v213 = vpack.c.bf16 %v209, %v209
    %v214 = vpack.c.bf16 %v210, %v210
    %v215 = vlaneseq
    %v216 = vshrl.u32 %v215, 7
    %v217 = vadd.s32 %v216, 4
    %218 = vset.pattern.permute.xlu0 %v217
    %219 = vperm.xlu0 %218, %v53
    %v220 = vpop.permute.xlu0 %219
    %v221 = vlaneseq
    %v222 = vshrl.u32 %v221, 7
    %v223 = vadd.s32 %v222, 12
    %224 = vset.pattern.permute.xlu0 %v223
    %225 = vperm.xlu0 %224, %v53
    %v226 = vpop.permute.xlu0 %225
    %v227 = vlaneseq
    %v228 = vshrl.u32 %v227, 7
    %v229 = vadd.s32 %v228, 4
    %230 = vset.pattern.permute.xlu0 %v229
    %231 = vperm.xlu0 %230, %v66
    %v232 = vpop.permute.xlu0 %231
    %v233 = vlaneseq
    %v234 = vshrl.u32 %v233, 7
    %v235 = vadd.s32 %v234, 12
    %236 = vset.pattern.permute.xlu0 %v235
    %237 = vperm.xlu0 %236, %v66
    %v238 = vpop.permute.xlu0 %237
    %vm239 = vcmp.eq.s32.totalorder %v220, %v52
    %vm240 = vcmp.eq.s32.totalorder %v226, %v52
    %vm241 = vcmp.eq.s32.totalorder %v232, %v52
    %vm242 = vcmp.eq.s32.totalorder %v238, %v52
    %v243 = vsel %vm239, 1, 0
    %v244 = vsel %vm240, 1, 0
    %v245 = vsel %vm241, 1, 0
    %v246 = vsel %vm242, 1, 0
    %v247 = vcvt.s32.f32 %v243
    %v248 = vcvt.s32.f32 %v244
    %v249 = vcvt.s32.f32 %v245
    %v250 = vcvt.s32.f32 %v246
    %v251 = vpack.c.bf16 %v247, %v247
    %v252 = vpack.c.bf16 %v248, %v248
    %v253 = vpack.c.bf16 %v249, %v249
    %v254 = vpack.c.bf16 %v250, %v250
    %v259 = vunpack.c.l.b16 %v91
    %v260 = vunpack.c.l.b16 %v92
    %v261 = vunpack.c.l.b16 %v93
    %v262 = vunpack.c.l.b16 %v94
    %v263 = vpack.c.b16 %v260, %v259
    %v264 = vpack.c.b16 %v262, %v261
    %v271 = vunpack.c.l.b16 %v131
    %v272 = vunpack.c.l.b16 %v132
    %v273 = vunpack.c.l.b16 %v133
    %v274 = vunpack.c.l.b16 %v134
    %v275 = vpack.c.b16 %v272, %v271
    %v276 = vpack.c.b16 %v274, %v273
    %v283 = vunpack.c.l.b16 %v171
    %v284 = vunpack.c.l.b16 %v172
    %v285 = vunpack.c.l.b16 %v173
    %v286 = vunpack.c.l.b16 %v174
    %v287 = vpack.c.b16 %v284, %v283
    %v288 = vpack.c.b16 %v286, %v285
    %v295 = vunpack.c.l.b16 %v211
    %v296 = vunpack.c.l.b16 %v212
    %v297 = vunpack.c.l.b16 %v213
    %v298 = vunpack.c.l.b16 %v214
    %v299 = vpack.c.b16 %v296, %v295
    %v300 = vpack.c.b16 %v298, %v297
    %v307 = vunpack.c.l.b16 %v251
    %v308 = vunpack.c.l.b16 %v252
    %v309 = vunpack.c.l.b16 %v253
    %v310 = vunpack.c.l.b16 %v254
    %v311 = vpack.c.b16 %v308, %v307
    %v312 = vpack.c.b16 %v310, %v309
    %v315 = vld [vmem:[#allocation6] sm:$0xf]
    %v316 = vld [vmem:[#allocation6 + $0x4] sm:$0xf]
    %v317 = vld [vmem:[#allocation6 + $0x8] sm:$0xf]
    %v318 = vld [vmem:[#allocation6 + $0xc] sm:$0xf]
    %v319 = vld [vmem:[#allocation6 + $0x10] sm:$0xf]
    %v320 = vld [vmem:[#allocation6 + $0x14] sm:$0xf]
    %v321 = vld [vmem:[#allocation6 + $0x18] sm:$0xf]
    %v322 = vld [vmem:[#allocation6 + $0x1c] sm:$0xf]
    %v323 = vld [vmem:[#allocation6 + $0x20] sm:$0xf]
    %v324 = vld [vmem:[#allocation6 + $0x24] sm:$0xf]
    %v325 = vld [vmem:[#allocation6 + $0x28] sm:$0xf]
    %v326 = vld [vmem:[#allocation6 + $0x2c] sm:$0xf]
    %v327 = vld [vmem:[#allocation6 + $0x30] sm:$0xf]
    %v328 = vld [vmem:[#allocation6 + $0x34] sm:$0xf]
    %v329 = vld [vmem:[#allocation6 + $0x38] sm:$0xf]
    %v330 = vld [vmem:[#allocation6 + $0x3c] sm:$0xf]
    %v331 = vld [vmem:[#allocation6 + $0x40] sm:$0xf]
    %v332 = vld [vmem:[#allocation6 + $0x44] sm:$0xf]
    %v333 = vld [vmem:[#allocation6 + $0x48] sm:$0xf]
    %v334 = vld [vmem:[#allocation6 + $0x4c] sm:$0xf]
    %v335 = vld [vmem:[#allocation6 + $0x50] sm:$0xf]
    %v336 = vld [vmem:[#allocation6 + $0x54] sm:$0xf]
    %v337 = vld [vmem:[#allocation6 + $0x58] sm:$0xf]
    %v338 = vld [vmem:[#allocation6 + $0x5c] sm:$0xf]
    %v339 = vld [vmem:[#allocation6 + $0x60] sm:$0xf]
    %v340 = vld [vmem:[#allocation6 + $0x64] sm:$0xf]
    %v341 = vld [vmem:[#allocation6 + $0x68] sm:$0xf]
    %v342 = vld [vmem:[#allocation6 + $0x6c] sm:$0xf]
    %v343 = vld [vmem:[#allocation6 + $0x70] sm:$0xf]
    %v344 = vld [vmem:[#allocation6 + $0x74] sm:$0xf]
    %v345 = vld [vmem:[#allocation6 + $0x78] sm:$0xf]
    %v346 = vld [vmem:[#allocation6 + $0x7c] sm:$0xf]
    %v347 = vld [vmem:[#allocation6 + $0x80] sm:$0xf]
    %v348 = vld [vmem:[#allocation6 + $0x84] sm:$0xf]
    %v349 = vld [vmem:[#allocation6 + $0x88] sm:$0xf]
    %v350 = vld [vmem:[#allocation6 + $0x8c] sm:$0xf]
    %v351 = vld [vmem:[#allocation6 + $0x90] sm:$0xf]
    %v352 = vld [vmem:[#allocation6 + $0x94] sm:$0xf]
    %v353 = vld [vmem:[#allocation6 + $0x98] sm:$0xf]
    %v354 = vld [vmem:[#allocation6 + $0x9c] sm:$0xf]
    %v355 = vld [vmem:[#allocation6 + $0xa0] sm:$0xf]
    %v356 = vld [vmem:[#allocation6 + $0xa4] sm:$0xf]
    %v357 = vld [vmem:[#allocation6 + $0xa8] sm:$0xf]
    %v358 = vld [vmem:[#allocation6 + $0xac] sm:$0xf]
    %v359 = vld [vmem:[#allocation6 + $0xb0] sm:$0xf]
    %v360 = vld [vmem:[#allocation6 + $0xb4] sm:$0xf]
    %v361 = vld [vmem:[#allocation6 + $0xb8] sm:$0xf]
    %v362 = vld [vmem:[#allocation6 + $0xbc] sm:$0xf]
    %v363 = vld [vmem:[#allocation6 + $0xc0] sm:$0xf]
    %v364 = vld [vmem:[#allocation6 + $0xc4] sm:$0xf]
    %v365 = vld [vmem:[#allocation6 + $0xc8] sm:$0xf]
    %v366 = vld [vmem:[#allocation6 + $0xcc] sm:$0xf]
    %v367 = vld [vmem:[#allocation6 + $0xd0] sm:$0xf]
    %v368 = vld [vmem:[#allocation6 + $0xd4] sm:$0xf]
    %v369 = vld [vmem:[#allocation6 + $0xd8] sm:$0xf]
    %v370 = vld [vmem:[#allocation6 + $0xdc] sm:$0xf]
    %v371 = vld [vmem:[#allocation6 + $0xe0] sm:$0xf]
    %v372 = vld [vmem:[#allocation6 + $0xe4] sm:$0xf]
    %v373 = vld [vmem:[#allocation6 + $0xe8] sm:$0xf]
    %v374 = vld [vmem:[#allocation6 + $0xec] sm:$0xf]
    %v375 = vld [vmem:[#allocation6 + $0xf0] sm:$0xf]
    %v376 = vld [vmem:[#allocation6 + $0xf4] sm:$0xf]
    %v377 = vld [vmem:[#allocation6 + $0xf8] sm:$0xf]
    %v378 = vld [vmem:[#allocation6 + $0xfc] sm:$0xf]
    %v379 = vld [vmem:[#allocation6 + $0x100] sm:$0xf]
    %v380 = vld [vmem:[#allocation6 + $0x104] sm:$0xf]
    %v381 = vld [vmem:[#allocation6 + $0x108] sm:$0xf]
    %v382 = vld [vmem:[#allocation6 + $0x10c] sm:$0xf]
    %v383 = vld [vmem:[#allocation6 + $0x110] sm:$0xf]
    %v384 = vld [vmem:[#allocation6 + $0x114] sm:$0xf]
    %v385 = vld [vmem:[#allocation6 + $0x118] sm:$0xf]
    %v386 = vld [vmem:[#allocation6 + $0x11c] sm:$0xf]
    %v387 = vld [vmem:[#allocation6 + $0x120] sm:$0xf]
    %v388 = vld [vmem:[#allocation6 + $0x124] sm:$0xf]
    %v389 = vld [vmem:[#allocation6 + $0x128] sm:$0xf]
    %v390 = vld [vmem:[#allocation6 + $0x12c] sm:$0xf]
    %v391 = vld [vmem:[#allocation6 + $0x130] sm:$0xf]
    %v392 = vld [vmem:[#allocation6 + $0x134] sm:$0xf]
    %v393 = vld [vmem:[#allocation6 + $0x138] sm:$0xf]
    %v394 = vld [vmem:[#allocation6 + $0x13c] sm:$0xf]
    %v475 = vunpack.c.l.b16 %v315
    %v476 = vunpack.c.l.b16 %v316
    %v477 = vunpack.c.l.b16 %v317
    %v478 = vunpack.c.l.b16 %v318
    %v479 = vunpack.c.l.b16 %v319
    %v480 = vunpack.c.l.b16 %v320
    %v481 = vunpack.c.l.b16 %v321
    %v482 = vunpack.c.l.b16 %v322
    %v483 = vunpack.c.l.b16 %v323
    %v484 = vunpack.c.l.b16 %v324
    %v485 = vunpack.c.l.b16 %v325
    %v486 = vunpack.c.l.b16 %v326
    %v487 = vunpack.c.l.b16 %v327
    %v488 = vunpack.c.l.b16 %v328
    %v489 = vunpack.c.l.b16 %v329
    %v490 = vunpack.c.l.b16 %v330
    %v491 = vunpack.c.l.b16 %v331
    %v492 = vunpack.c.l.b16 %v332
    %v493 = vunpack.c.l.b16 %v333
    %v494 = vunpack.c.l.b16 %v334
    %v495 = vunpack.c.l.b16 %v335
    %v496 = vunpack.c.l.b16 %v336
    %v497 = vunpack.c.l.b16 %v337
    %v498 = vunpack.c.l.b16 %v338
    %v499 = vunpack.c.l.b16 %v339
    %v500 = vunpack.c.l.b16 %v340
    %v501 = vunpack.c.l.b16 %v341
    %v502 = vunpack.c.l.b16 %v342
    %v503 = vunpack.c.l.b16 %v343
    %v504 = vunpack.c.l.b16 %v344
    %v505 = vunpack.c.l.b16 %v345
    %v506 = vunpack.c.l.b16 %v346
    %v507 = vunpack.c.l.b16 %v347
    %v508 = vunpack.c.l.b16 %v348
    %v509 = vunpack.c.l.b16 %v349
    %v510 = vunpack.c.l.b16 %v350
    %v511 = vunpack.c.l.b16 %v351
    %v512 = vunpack.c.l.b16 %v352
    %v513 = vunpack.c.l.b16 %v353
    %v514 = vunpack.c.l.b16 %v354
    %v515 = vunpack.c.l.b16 %v355
    %v516 = vunpack.c.l.b16 %v356
    %v517 = vunpack.c.l.b16 %v357
    %v518 = vunpack.c.l.b16 %v358
    %v519 = vunpack.c.l.b16 %v359
    %v520 = vunpack.c.l.b16 %v360
    %v521 = vunpack.c.l.b16 %v361
    %v522 = vunpack.c.l.b16 %v362
    %v523 = vunpack.c.l.b16 %v363
    %v524 = vunpack.c.l.b16 %v364
    %v525 = vunpack.c.l.b16 %v365
    %v526 = vunpack.c.l.b16 %v366
    %v527 = vunpack.c.l.b16 %v367
    %v528 = vunpack.c.l.b16 %v368
    %v529 = vunpack.c.l.b16 %v369
    %v530 = vunpack.c.l.b16 %v370
    %v531 = vunpack.c.l.b16 %v371
    %v532 = vunpack.c.l.b16 %v372
    %v533 = vunpack.c.l.b16 %v373
    %v534 = vunpack.c.l.b16 %v374
    %v535 = vunpack.c.l.b16 %v375
    %v536 = vunpack.c.l.b16 %v376
    %v537 = vunpack.c.l.b16 %v377
    %v538 = vunpack.c.l.b16 %v378
    %v539 = vunpack.c.l.b16 %v379
    %v540 = vunpack.c.l.b16 %v380
    %v541 = vunpack.c.l.b16 %v381
    %v542 = vunpack.c.l.b16 %v382
    %v543 = vunpack.c.l.b16 %v383
    %v544 = vunpack.c.l.b16 %v384
    %v545 = vunpack.c.l.b16 %v385
    %v546 = vunpack.c.l.b16 %v386
    %v547 = vunpack.c.l.b16 %v387
    %v548 = vunpack.c.l.b16 %v388
    %v549 = vunpack.c.l.b16 %v389
    %v550 = vunpack.c.l.b16 %v390
    %v551 = vunpack.c.l.b16 %v391
    %v552 = vunpack.c.l.b16 %v392
    %v553 = vunpack.c.l.b16 %v393
    %v554 = vunpack.c.l.b16 %v394
    %v555 = vpack.c.b16 %v476, %v475
    %v556 = vpack.c.b16 %v478, %v477
    %v557 = vpack.c.b16 %v480, %v479
    %v558 = vpack.c.b16 %v482, %v481
    %v559 = vpack.c.b16 %v484, %v483
    %v560 = vpack.c.b16 %v486, %v485
    %v561 = vpack.c.b16 %v488, %v487
    %v562 = vpack.c.b16 %v490, %v489
    %v563 = vpack.c.b16 %v492, %v491
    %v564 = vpack.c.b16 %v494, %v493
    %v565 = vpack.c.b16 %v496, %v495
    %v566 = vpack.c.b16 %v498, %v497
    %v567 = vpack.c.b16 %v500, %v499
    %v568 = vpack.c.b16 %v502, %v501
    %v569 = vpack.c.b16 %v504, %v503
    %v570 = vpack.c.b16 %v506, %v505
    %v571 = vpack.c.b16 %v508, %v507
    %v572 = vpack.c.b16 %v510, %v509
    %v573 = vpack.c.b16 %v512, %v511
    %v574 = vpack.c.b16 %v514, %v513
    %v575 = vpack.c.b16 %v516, %v515
    %v576 = vpack.c.b16 %v518, %v517
    %v577 = vpack.c.b16 %v520, %v519
    %v578 = vpack.c.b16 %v522, %v521
    %v579 = vpack.c.b16 %v524, %v523
    %v580 = vpack.c.b16 %v526, %v525
    %v581 = vpack.c.b16 %v528, %v527
    %v582 = vpack.c.b16 %v530, %v529
    %v583 = vpack.c.b16 %v532, %v531
    %v584 = vpack.c.b16 %v534, %v533
    %v585 = vpack.c.b16 %v536, %v535
    %v586 = vpack.c.b16 %v538, %v537
    %v587 = vpack.c.b16 %v540, %v539
    %v588 = vpack.c.b16 %v542, %v541
    %v589 = vpack.c.b16 %v544, %v543
    %v590 = vpack.c.b16 %v546, %v545
    %v591 = vpack.c.b16 %v548, %v547
    %v592 = vpack.c.b16 %v550, %v549
    %v593 = vpack.c.b16 %v552, %v551
    %v594 = vpack.c.b16 %v554, %v553
    %635 = vmatpush.bf16.msra.mxu0 %v562
    %636 = vmatpush.bf16.msra.mxu0 %v561
    %637 = vmatpush.bf16.msra.mxu0 %v560
    %638 = vmatpush.bf16.msra.mxu0 %v559
    %639 = vmatpush.bf16.msra.mxu0 %v558
    %640 = vmatpush.bf16.msra.mxu0 %v557
    %641 = vmatpush.bf16.msra.mxu0 %v556
    %642 = vmatpush.bf16.msra.mxu0 %v555
    %643 = vmatmul.bf16.gmra.mxu0 %v263
    %v644 = vpop.f32.mrf.mxu0
    %v645 = vadd.f32 0.0, %v644
    %v646 = vpop.f32.mrf.mxu0
    %v647 = vadd.f32 0.0, %v646
    %648 = vmatmul.bf16.gmra.mxu0 %v264
    %v649 = vpop.f32.mrf.mxu0
    %v650 = vadd.f32 0.0, %v649
    %v651 = vpop.f32.mrf.mxu0
    %v652 = vadd.f32 0.0, %v651
    %653 = vdwg.mxu0
    %654 = vmatpush.bf16.msra.mxu0 %v570
    %655 = vmatpush.bf16.msra.mxu0 %v569
    %656 = vmatpush.bf16.msra.mxu0 %v568
    %657 = vmatpush.bf16.msra.mxu0 %v567
    %658 = vmatpush.bf16.msra.mxu0 %v566
    %659 = vmatpush.bf16.msra.mxu0 %v565
    %660 = vmatpush.bf16.msra.mxu0 %v564
    %661 = vmatpush.bf16.msra.mxu0 %v563
    %662 = vmatmul.bf16.gmra.mxu0 %v275
    %v663 = vpop.f32.mrf.mxu0
    %v664 = vadd.f32 %v645, %v663
    %v665 = vpop.f32.mrf.mxu0
    %v666 = vadd.f32 %v647, %v665
    %667 = vmatmul.bf16.gmra.mxu0 %v276
    %v668 = vpop.f32.mrf.mxu0
    %v669 = vadd.f32 %v650, %v668
    %v670 = vpop.f32.mrf.mxu0
    %v671 = vadd.f32 %v652, %v670
    %672 = vdwg.mxu0
    %673 = vmatpush.bf16.msra.mxu0 %v578
    %674 = vmatpush.bf16.msra.mxu0 %v577
    %675 = vmatpush.bf16.msra.mxu0 %v576
    %676 = vmatpush.bf16.msra.mxu0 %v575
    %677 = vmatpush.bf16.msra.mxu0 %v574
    %678 = vmatpush.bf16.msra.mxu0 %v573
    %679 = vmatpush.bf16.msra.mxu0 %v572
    %680 = vmatpush.bf16.msra.mxu0 %v571
    %681 = vmatmul.bf16.gmra.mxu0 %v287
    %v682 = vpop.f32.mrf.mxu0
    %v683 = vadd.f32 %v664, %v682
    %v684 = vpop.f32.mrf.mxu0
    %v685 = vadd.f32 %v666, %v684
    %686 = vmatmul.bf16.gmra.mxu0 %v288
    %v687 = vpop.f32.mrf.mxu0
    %v688 = vadd.f32 %v669, %v687
    %v689 = vpop.f32.mrf.mxu0
    %v690 = vadd.f32 %v671, %v689
    %691 = vdwg.mxu0
    %692 = vmatpush.bf16.msra.mxu0 %v586
    %693 = vmatpush.bf16.msra.mxu0 %v585
    %694 = vmatpush.bf16.msra.mxu0 %v584
    %695 = vmatpush.bf16.msra.mxu0 %v583
    %696 = vmatpush.bf16.msra.mxu0 %v582
    %697 = vmatpush.bf16.msra.mxu0 %v581
    %698 = vmatpush.bf16.msra.mxu0 %v580
    %699 = vmatpush.bf16.msra.mxu0 %v579
    %700 = vmatmul.bf16.gmra.mxu0 %v299
    %v701 = vpop.f32.mrf.mxu0
    %v702 = vadd.f32 %v683, %v701
    %v703 = vpop.f32.mrf.mxu0
    %v704 = vadd.f32 %v685, %v703
    %705 = vmatmul.bf16.gmra.mxu0 %v300
    %v706 = vpop.f32.mrf.mxu0
    %v707 = vadd.f32 %v688, %v706
    %v708 = vpop.f32.mrf.mxu0
    %v709 = vadd.f32 %v690, %v708
    %710 = vdwg.mxu0
    %711 = vmatpush.bf16.msra.mxu0 %v594
    %712 = vmatpush.bf16.msra.mxu0 %v593
    %713 = vmatpush.bf16.msra.mxu0 %v592
    %714 = vmatpush.bf16.msra.mxu0 %v591
    %715 = vmatpush.bf16.msra.mxu0 %v590
    %716 = vmatpush.bf16.msra.mxu0 %v589
    %717 = vmatpush.bf16.msra.mxu0 %v588
    %718 = vmatpush.bf16.msra.mxu0 %v587
    %719 = vmatmul.bf16.gmra.mxu0 %v311
    %v720 = vpop.f32.mrf.mxu0
    %v721 = vadd.f32 %v702, %v720
    %v722 = vpop.f32.mrf.mxu0
    %v723 = vadd.f32 %v704, %v722
    %724 = vmatmul.bf16.gmra.mxu0 %v312
    %v725 = vpop.f32.mrf.mxu0
    %v726 = vadd.f32 %v707, %v725
    %v727 = vpop.f32.mrf.mxu0
    %v728 = vadd.f32 %v709, %v727
    %729 = vdwg.mxu0
    %s730 = smul.u32 0, 16
    %v731 = vlaneseq
    %v732 = vshrl.u32 %v731, 7
    %v733 = vadd.s32 %v732, 8
    %v734 = vstv %s730
    %v735 = vadd.s32 %v734, %v732
    %v736 = vadd.s32 %v734, %v733
    %vm737 = vcmp.lt.s32.totalorder %v735, 12
    %vm738 = vcmp.lt.s32.totalorder %v736, 12
    %v739 = vsel %vm737, 1, 0
    %v740 = vsel %vm738, 1, 0
    %vm741 = vcmp.eq.s32.totalorder %v739, 1
    %vm742 = vcmp.eq.s32.totalorder %v740, 1
    %v743 = vsel %vm741, %v721, -inf
    %v744 = vsel %vm742, %v723, -inf
    %v745 = vsel %vm741, %v726, -inf
    %v746 = vsel %vm742, %v728, -inf
    %v747 = vld [vmem:[#allocation2] sm:$0x3]
    %v748 = vmax.f32 %v743, %v744
    %v749 = vrot.slane %v748, 4
    %v750 = vmax.f32 %v748, %v749
    %v751 = vrot.slane %v750, 2
    %v752 = vmax.f32 %v750, %v751
    %v753 = vrot.slane %v752, 1
    %v754 = vmax.f32 %v752, %v753
    %v755 = vmax.f32 %v745, %v746
    %v756 = vrot.slane %v755, 4
    %v757 = vmax.f32 %v755, %v756
    %v758 = vrot.slane %v757, 2
    %v759 = vmax.f32 %v757, %v758
    %v760 = vrot.slane %v759, 1
    %v761 = vmax.f32 %v759, %v760
    %vm764 = vcmask 1041409
    %v765 = vsel %vm764, %v761, %v754
    %v767 = vmax.f32 %v747, %v765
    %768 = vst [vmem:[#allocation2] sm:$0x3] %v767
    // Predicated region
    $region26: #{tpu_custom_call.1} parent=1 // pred_check
      %p769 = pneg %p45
    $region27: #{tpu_custom_call.1} parent=1 // pred_check_branch
      %771 = sbr.rel (%p769) target = $region29
    $region28: #{tpu_custom_call.1} parent=1 // pred_region
      %v772 = vld [vmem:[#allocation2] sm:$0x3]
      %v773 = vld [vmem:[%s2] sm:$0x1]
      %v775 = vperm.slane %v773, 0
      %v777 = vadd.f32 %v772, %v775
      %v778 = vmax.f32 %v777, 0.0
      %779 = vst [vmem:[#allocation8] sm:$0x3] %v778
    $region29: #{tpu_custom_call.1} parent=1 // pred_fallthru
      _
    // Predicated region
    $region30: #{tpu_custom_call.1} parent=1 // pred_check
      _
    $region31: #{tpu_custom_call.1} parent=1 // pred_check_branch
      %781 = sbr.rel (0) target = $region33
    $region32: #{tpu_custom_call.1} parent=1 // pred_region
      %783 = vsyncadd [#allocation5], 0
      %s785 = sshll.u32 [#allocation8], 4
      %s786 = int_to_ptr.vmem [resolvable:$true] %s785
      %s787 = sshll.u32 %s3, 4
      %s788 = int_to_ptr.hbm [resolvable:$true] %s787
      %790 = dma.vmem_to_hbm [thread:$0]  %s786, 32, %s788, [#allocation5]
    $region33: #{tpu_custom_call.1} parent=1 // pred_fallthru
      _
    // Predicated region
    $region34: #{tpu_custom_call.1} parent=1 // pred_check
      _
    $region35: #{tpu_custom_call.1} parent=1 // pred_check_branch
      %792 = sbr.rel (0) target = $region37
    $region36: #{tpu_custom_call.1} parent=1 // pred_region
      %794 = dma.done [#allocation5], 32
    $region37: #{tpu_custom_call.1} parent=1 // pred_fallthru
      _
    %795 = vsyncpa [#allocation4], 1
    %796 = vsyncpa [#allocation7], 1
    %797 = vsyncpa [#allocation5], 1

</llo_original>
